<compile_context>
chip_gen: v5e
topology: v5e:2x2
jax: 0.10.0
libtpu: 0.0.40
codegen_flags: <defaults>
</compile_context>

<pallas_src>
import numpy as np
import jax
import jax.numpy as jnp
from jax.experimental import pallas as pl
from jax.experimental.pallas import tpu as pltpu


def _round_up(x, m):
    return ((x + m - 1) // m) * m


def _reverse_pool_kernel(x_ref, w_ref, o_ref):
    # x_ref: (TILE_M, K)   w_ref: (K, V_pad)   o_ref: (TILE_M, V_pad)
    # Contract the shared K dim directly; W is already (K, V_pad), so no
    # in-kernel transpose is needed.
    o_ref[...] = jnp.dot(
        x_ref[...], w_ref[...], preferred_element_type=jnp.float32
    ).astype(o_ref.dtype)


def make_pool_matrix(vertices, coarsening, dtype=jnp.float32):
    """Deterministic pool matrix, identical to GraphReversePool.make_matrix."""
    m = np.zeros((vertices, len(coarsening)), dtype=np.float32)
    for j, cluster in enumerate(coarsening):
        for i in cluster:
            m[i, j] = 1.0
    return jnp.asarray(m, dtype=dtype)


def _choose_tile_m(m_rows, k, v_pad, vmem_budget_bytes=24 * 1024 * 1024):
    """Pick TILE_M (multiple of 8, <=512) fitting double-buffered tiles + W."""
    bytes_per_row = 4 * (k + v_pad) * 2           # f32, 2 pipeline buffers
    w_bytes = 4 * k * v_pad
    max_rows = max(8, (vmem_budget_bytes - w_bytes) // max(bytes_per_row, 1))
    tile = min(512, _round_up(m_rows, 8), int(max_rows))
    return max(8, (tile // 8) * 8)


def graph_reverse_pool(x, pool_matrix):
    """x: (..., num_clusters) -> (..., vertices) == F.linear(x, pool_matrix)."""
    *lead, k = x.shape
    v, k_w = pool_matrix.shape
    assert k == k_w, f"last dim of input ({k}) must match pool matrix cols ({k_w})"
    m = int(np.prod(lead)) if lead else 1

    # Lane-dense output: pad vertices up to a multiple of 128 with zero rows of
    # W (exact: padded output columns are all-zero and sliced off afterwards).
    v_pad = _round_up(v, 128)
    w_kv = (
        jnp.zeros((k, v_pad), dtype=pool_matrix.dtype)
        .at[:, :v]
        .set(pool_matrix.T)
    )

    tile_m = _choose_tile_m(m, k, v_pad)
    m_pad = _round_up(max(m, tile_m), tile_m)
    x2d = jnp.zeros((m_pad, k), dtype=x.dtype).at[:m, :].set(x.reshape(m, k))

    grid = (m_pad // tile_m,)

    cost = pl.CostEstimate(
        flops=2 * m_pad * k * v_pad,
        transcendentals=0,
        bytes_accessed=4 * (m_pad * k + k * v_pad + m_pad * v_pad),
    )

    out2d = pl.pallas_call(
        _reverse_pool_kernel,
        out_shape=jax.ShapeDtypeStruct((m_pad, v_pad), x.dtype),
        grid=grid,
        in_specs=[
            pl.BlockSpec((tile_m, k), lambda i: (i, 0)),   # x streams over M
            pl.BlockSpec((k, v_pad), lambda i: (0, 0)),    # W resident in VMEM
        ],
        out_specs=pl.BlockSpec((tile_m, v_pad), lambda i: (i, 0)),
        compiler_params=pltpu.CompilerParams(
            dimension_semantics=("parallel",),
        ),
        cost_estimate=cost,
    )(x2d, w_kv)

    return out2d[:m, :v].reshape(*lead, v)


def _reference(x, pool_matrix):
    # Pure-JAX reference of F.linear(x, W, bias=None)
    return jnp.einsum("...k,vk->...v", x, pool_matrix)


if __name__ == "__main__":
    # Deterministic setup: 16 vertices coarsened into 8 clusters of 2 vertices each.
    vertices = 16
    coarsening = [[2 * j, 2 * j + 1] for j in range(8)]
    num_clusters = len(coarsening)

    pool_matrix = make_pool_matrix(vertices, coarsening)  # (16, 8)

    key = jax.random.PRNGKey(0)
    batch, channels = 2, 4
    x = jax.random.normal(key, (batch, channels, num_clusters), dtype=jnp.float32)

    y = graph_reverse_pool(x, pool_matrix)
    y = jax.block_until_ready(y)

    y_ref = _reference(x, pool_matrix)
    assert y.shape == (batch, channels, vertices), y.shape
    np.testing.assert_allclose(np.asarray(y), np.asarray(y_ref), rtol=1e-6, atol=1e-6)

    print("KERNEL_OK")
</pallas_src>

<mosaic_0001>
module attributes {stable_mosaic.version = 11 : i64} {
  func.func @_reverse_pool_kernel(%arg0: i32, %arg1: memref<8x8xf32, #tpu.memory_space<vmem>>, %arg2: memref<8x128xf32, #tpu.memory_space<vmem>>, %arg3: memref<8x128xf32, #tpu.memory_space<vmem>>) attributes {dimension_semantics = [#tpu.dimension_semantics<parallel>], iteration_bounds = array<i64: 1>, scalar_prefetch = 0 : i64, scratch_operands = 0 : i64, tpu.core_type = #tpu.core_type<tc>, window_params = [{transform_indices = @transform_0, window_bounds = array<i64: 8, 8>}, {pipeline_mode = #tpu.pipeline_mode<synchronous>, transform_indices = @transform_1, window_bounds = array<i64: 8, 128>}, {transform_indices = @transform_2, window_bounds = array<i64: 8, 128>}]} {
    %c0 = arith.constant 0 : index
    %c0_0 = arith.constant 0 : index
    %0 = vector.load %arg1[%c0, %c0_0] : memref<8x8xf32, #tpu.memory_space<vmem>>, vector<8x8xf32>
    %c0_1 = arith.constant 0 : index
    %c0_2 = arith.constant 0 : index
    %1 = vector.load %arg2[%c0_1, %c0_2] : memref<8x128xf32, #tpu.memory_space<vmem>>, vector<8x128xf32>
    %cst = arith.constant dense<0.000000e+00> : vector<8x128xf32>
    %2 = tpu.matmul %0, %1, %cst {dimension_numbers = #tpu.dot_dimension_numbers<[1], [0], [0], [1], [0, 0, 1, 1], [], []>} : vector<8x8xf32>, vector<8x128xf32>, vector<8x128xf32> -> vector<8x128xf32>
    %c0_3 = arith.constant 0 : index
    %c0_4 = arith.constant 0 : index
    %3 = vector.load %arg3[%c0_3, %c0_4] : memref<8x128xf32, #tpu.memory_space<vmem>>, vector<8x128xf32>
    tpu.vector_store %arg3[%c0_3, %c0_4], %2 {strides = array<i32>} : memref<8x128xf32, #tpu.memory_space<vmem>>, vector<8x128xf32>,
    return
  }
  func.func @transform_0(%arg0: i32) -> (i32, i32) {
    %c0_i32 = arith.constant 0 : i32
    %c0_i32_0 = arith.constant 0 : i32
    return %arg0, %c0_i32 : i32, i32
  }
  func.func @transform_1(%arg0: i32) -> (i32, i32) {
    %c0_i32 = arith.constant 0 : i32
    %c0_i32_0 = arith.constant 0 : i32
    %c0_i32_1 = arith.constant 0 : i32
    return %c0_i32, %c0_i32_0 : i32, i32
  }
  func.func @transform_2(%arg0: i32) -> (i32, i32) {
    %c0_i32 = arith.constant 0 : i32
    %c0_i32_0 = arith.constant 0 : i32
    return %arg0, %c0_i32 : i32, i32
  }
}

</mosaic_0001>

<llo_original>
// kernel: tpu_custom_call.1
$region0: #{tpu_custom_call.1}
  #allocation0 [shape = 'u32[]', space=smem, size = 0x4, offset = 0x4, fixed_abs, tag = 'smem constant byte address 0x4 - core index']
  #allocation1 [shape = 'u32[72,128]{1,0:T(1,128)}', space=vmem, size = 0x9000, scoped, tag = 'internal scratch']
  %s0 = inlined_call_operand.hbm [shape: f32[8,8], index: 0, kind: input, shape index: {}]
  %s1 = inlined_call_operand.hbm [shape: f32[8,128], index: 1, kind: input, shape index: {}]
  %s2 = inlined_call_operand.hbm [shape: f32[8,128], index: 2, kind: output, shape index: {}]
  %s3 = sld [smem:[#allocation0]]
  $region26: #{tpu_custom_call.1} parent=0
    _
  %s5 = ssub.s32 1, %s3
  %s6 = scalar_select 0, %s5, %s3
  $region1: #{tpu_custom_call.1} parent=0
    #allocation2 [shape = 'u8[4096]{0}', space=vmem, size = 0x1000, scoped, tag = 'input window, operand 0, single buffered']
    #allocation3 [shape = 's32[1]{0}', space=sflag, size = 0x4, scoped, tag = 'scoped memory for tpu_custom_call.1']
    #allocation4 [shape = 's32[1]{0}', space=sflag, size = 0x4, scoped, tag = 'scoped memory for tpu_custom_call.1']
    #allocation5 [shape = 'u8[4096]{0}', space=vmem, size = 0x1000, scoped, tag = 'input window, operand 1, single buffered']
    #allocation6 [shape = 's32[1]{0}', space=sflag, size = 0x4, scoped, tag = 'scoped memory for tpu_custom_call.1']
    #allocation7 [shape = 'u8[4096]{0}', space=vmem, size = 0x1000, scoped, tag = 'output window, operand 0, single buffered']
    %7 = vsyncpa [#allocation3], 0
    %8 = vsyncpa [#allocation6], 0
    %9 = vsyncpa [#allocation4], 0
    // Predicated region
    $region2: #{tpu_custom_call.1} parent=1 // pred_check
      _
    $region3: #{tpu_custom_call.1} parent=1 // pred_check_branch
      %11 = sbr.rel (0) target = $region5
    $region4: #{tpu_custom_call.1} parent=1 // pred_region
      %13 = vsyncadd [#allocation3], 0
      %s15 = sshll.u32 %s0, 4
      %s16 = int_to_ptr.hbm [resolvable:$true] %s15
      %s17 = sshll.u32 [#allocation2], 4
      %s18 = int_to_ptr.vmem [resolvable:$true] %s17
      %20 = dma.hbm_to_vmem [thread:$0]  %s16, 128, %s18, [#allocation3]
    $region5: #{tpu_custom_call.1} parent=1 // pred_fallthru
      _
    // Predicated region
    $region6: #{tpu_custom_call.1} parent=1 // pred_check
      _
    $region7: #{tpu_custom_call.1} parent=1 // pred_check_branch
      %22 = sbr.rel (0) target = $region9
    $region8: #{tpu_custom_call.1} parent=1 // pred_region
      %24 = vsyncadd [#allocation6], 0
      %s26 = sshll.u32 %s1, 4
      %s27 = int_to_ptr.hbm [resolvable:$true] %s26
      %s28 = sshll.u32 [#allocation5], 4
      %s29 = int_to_ptr.vmem [resolvable:$true] %s28
      %31 = dma.hbm_to_vmem [thread:$0]  %s27, 128, %s29, [#allocation6]
    $region9: #{tpu_custom_call.1} parent=1 // pred_fallthru
      _
    // Predicated region
    $region10: #{tpu_custom_call.1} parent=1 // pred_check
      _
    $region11: #{tpu_custom_call.1} parent=1 // pred_check_branch
      %33 = sbr.rel (0) target = $region13
    $region12: #{tpu_custom_call.1} parent=1 // pred_region
      %35 = dma.done [#allocation3], 128
    $region13: #{tpu_custom_call.1} parent=1 // pred_fallthru
      _
    // Predicated region
    $region14: #{tpu_custom_call.1} parent=1 // pred_check
      _
    $region15: #{tpu_custom_call.1} parent=1 // pred_check_branch
      %37 = sbr.rel (0) target = $region17
    $region16: #{tpu_custom_call.1} parent=1 // pred_region
      %39 = dma.done [#allocation6], 128
    $region17: #{tpu_custom_call.1} parent=1 // pred_fallthru
      _
    %v40 = vld [vmem:[#allocation2] sm:$0xff]
    %v41 = vld [vmem:[#allocation5] sm:$0xff]
    %vm42 = vcmask 64512
    %v44 = vsel %vm42, %v40, 0
    %46 = vmatpush.msra.mxu0 0.0
    %47 = vmatpush.msra.mxu0 0.0
    %48 = vmatpush.msra.mxu0 0.0
    %49 = vmatpush.msra.mxu0 0.0
    %50 = vmatpush.msra.mxu0 0.0
    %51 = vmatpush.msra.mxu0 0.0
    %52 = vmatpush.msra.mxu0 0.0
    %53 = vmatpush.msra.mxu0 0.0
    %54 = vmatpush.msra.mxu0 0.0
    %55 = vmatpush.msra.mxu0 0.0
    %56 = vmatpush.msra.mxu0 0.0
    %57 = vmatpush.msra.mxu0 0.0
    %58 = vmatpush.msra.mxu0 0.0
    %59 = vmatpush.msra.mxu0 0.0
    %60 = vmatpush.msra.mxu0 0.0
    %61 = vmatpush.msra.mxu0 %v41
    %62 = vmatmul.f32.gmra.mxu0 %v44
    %v63 = vpop.f32.mrf.mxu0
    %v64 = vadd.f32 0.0, %v63
    %65 = vdwg.mxu0
    %66 = vst [vmem:[#allocation7] sm:$0xff] %v64
    // Predicated region
    $region18: #{tpu_custom_call.1} parent=1 // pred_check
      _
    $region19: #{tpu_custom_call.1} parent=1 // pred_check_branch
      %68 = sbr.rel (0) target = $region21
    $region20: #{tpu_custom_call.1} parent=1 // pred_region
      %70 = vsyncadd [#allocation4], 0
      %s72 = sshll.u32 [#allocation7], 4
      %s73 = int_to_ptr.vmem [resolvable:$true] %s72
      %s74 = sshll.u32 %s2, 4
      %s75 = int_to_ptr.hbm [resolvable:$true] %s74
      %77 = dma.vmem_to_hbm [thread:$0]  %s73, 128, %s75, [#allocation4]
    $region21: #{tpu_custom_call.1} parent=1 // pred_fallthru
      _
    // Predicated region
    $region22: #{tpu_custom_call.1} parent=1 // pred_check
      _
    $region23: #{tpu_custom_call.1} parent=1 // pred_check_branch
      %79 = sbr.rel (0) target = $region25
    $region24: #{tpu_custom_call.1} parent=1 // pred_region
      %81 = dma.done [#allocation4], 128
    $region25: #{tpu_custom_call.1} parent=1 // pred_fallthru
      _
    %82 = vsyncpa [#allocation3], 1
    %83 = vsyncpa [#allocation6], 1
    %84 = vsyncpa [#allocation4], 1

</llo_original>
